<compile_context>
chip_gen: v7x
topology: tpu7x:2x2x1
jax: 0.10.0
libtpu: 0.0.40
codegen_flags: <defaults>
</compile_context>

<pallas_src>
import functools
import math

import jax
import jax.numpy as jnp
from jax.experimental import pallas as pl
from jax.experimental.pallas import tpu as pltpu

LN_EPS = 1e-12  # BertConfig default layer_norm_eps


def _vmem_capacity_bytes():
    """Best-effort query of physical VMEM; conservative (v7x) fallback."""
    try:
        return int(pltpu.get_tpu_info().vmem_capacity_bytes)
    except Exception:
        return 64 * 1024 * 1024


_VMEM_CAP = _vmem_capacity_bytes()
# ~100 MiB on 128 MiB parts (v5e/v6e), ~51 MiB on 64 MiB v7x — leaves headroom
# for compiler-internal scratch, semaphores and the second pipeline buffer.
VMEM_LIMIT = min(int(_VMEM_CAP * 0.80), 100 * 1024 * 1024)
VMEM_BUDGET = int(VMEM_LIMIT * 0.90)

# Dense tile preferences: bigger on 128-MiB parts (grid-step overhead, not the
# MXU, is the limiter there); tighter on v7x's 64 MiB VMEM.
if _VMEM_CAP >= 96 * 1024 * 1024:
    PREF_TM, PREF_TN, PREF_TK = 512, 512, 1024
else:
    PREF_TM, PREF_TN, PREF_TK = 256, 256, 512


def _pick_tile(dim, pref, align):
    """Largest multiple of `align` <= `pref` that divides `dim`, else the full dim.

    Returning the full dim is always legal for a BlockSpec (block == array extent).
    """
    if dim <= pref:
        return dim
    t = (pref // align) * align
    while t >= align:
        if dim % t == 0:
            return t
        t -= align
    return dim


def _fit_dense_tiles(M, N, K, out_bytes=2):
    """Tiles for the plain dense kernel, shrunk until the double-buffered
    operand/output blocks + f32 accumulator fit the VMEM budget."""
    pm, pn, pk = PREF_TM, PREF_TN, PREF_TK
    while True:
        tm = _pick_tile(M, pm, 16)     # bf16 LHS: 16 rows per sublane group
        tn = _pick_tile(N, pn, 128)
        tk = _pick_tile(K, pk, 128)
        fp = (2 * (tm * tk * 2 + tk * tn * 2 + tn * 4 + tm * tn * out_bytes)
              + tm * tn * 4)
        if fp <= VMEM_BUDGET or (pm <= 16 and pn <= 128 and pk <= 128):
            # TODO(synk): if the full-dim fallback still exceeds the budget
            # (awkward dims on very large models), pad N/K to a multiple of 128
            # instead of taking the whole axis.
            return tm, tn, tk
        pm, pn, pk = max(pm // 2, 16), max(pn // 2, 128), max(pk // 2, 128)


def _fit_fused_ln_tiles(M, N, K, out_bytes=2):
    """Tiles for the fused matmul+residual+LayerNorm kernel (full N per block)."""
    pm, pk = PREF_TM, PREF_TK
    while True:
        tm = _pick_tile(M, pm, 16)
        tk = _pick_tile(K, pk, 128)
        fp = (2 * (tm * tk * 2 + tk * N * 2 + N * 4 + tm * N * 2 + 2 * N * 4
                   + tm * N * out_bytes)
              + tm * N * 4)
        if fp <= VMEM_BUDGET or (pm <= 16 and pk <= 128):
            return tm, tk
        pm, pk = max(pm // 2, 16), max(pk // 2, 128)


# ----------------------------- Pallas kernels ------------------------------

def _matmul_kernel(x_ref, w_ref, b_ref, o_ref, acc_ref, *, relu):
    """Tiled matmul: bf16 operands, f32 accumulation, bias (+ optional relu) epilogue."""
    k = pl.program_id(2)

    @pl.when(k == 0)
    def _():
        acc_ref[...] = jnp.zeros_like(acc_ref)

    acc_ref[...] += jnp.dot(x_ref[...], w_ref[...],
                            preferred_element_type=jnp.float32)

    @pl.when(k == pl.num_programs(2) - 1)
    def _():
        y = acc_ref[...] + b_ref[...]
        if relu:
            y = jnp.maximum(y, 0.0)
        o_ref[...] = y.astype(o_ref.dtype)


def _matmul_res_ln_kernel(x_ref, w_ref, b_ref, res_ref, g_ref, beta_ref,
                          o_ref, acc_ref):
    """Fused matmul + bias + residual add + LayerNorm (full feature dim per block)."""
    k = pl.program_id(1)

    @pl.when(k == 0)
    def _():
        acc_ref[...] = jnp.zeros_like(acc_ref)

    acc_ref[...] += jnp.dot(x_ref[...], w_ref[...],
                            preferred_element_type=jnp.float32)

    @pl.when(k == pl.num_programs(1) - 1)
    def _():
        y = acc_ref[...] + b_ref[...] + res_ref[...].astype(jnp.float32)
        mean = jnp.mean(y, axis=-1, keepdims=True)
        var = jnp.mean((y - mean) ** 2, axis=-1, keepdims=True)
        o_ref[...] = ((y - mean) * jax.lax.rsqrt(var + LN_EPS) * g_ref[...]
                      + beta_ref[...]).astype(o_ref.dtype)


def _layernorm_kernel(x_ref, g_ref, b_ref, o_ref):
    x = x_ref[...].astype(jnp.float32)
    mean = jnp.mean(x, axis=-1, keepdims=True)
    var = jnp.mean((x - mean) ** 2, axis=-1, keepdims=True)
    o_ref[...] = ((x - mean) * jax.lax.rsqrt(var + LN_EPS) * g_ref[...]
                  + b_ref[...]).astype(o_ref.dtype)


def _attention_batch_kernel(qkv_ref, bias_ref, probs_ref, ctx_ref, *,
                            num_heads, head_dim, hidden):
    """One batch element per grid step; all heads handled with static unroll.

    qkv_ref : (S, 3*D) bf16 ref (Q columns pre-scaled by 1/sqrt(head_dim)).
              Per-head Q/K/V are loaded as narrow static ref slices — the full
              fused block is never materialized as one value (no vreg spills).
    bias_ref: (1, 1, S) f32 additive mask bias over key positions.
    probs_ref: (1, H, S, S); ctx_ref: (S, D) bf16, written per-head in place.
    """
    S = qkv_ref.shape[0]
    # Hoisted once per grid step (JAX does not CSE broadcast_in_dim).
    bias = jnp.broadcast_to(bias_ref[0], (S, S))
    for h in range(num_heads):                       # static unroll over heads
        q = qkv_ref[:, h * head_dim:(h + 1) * head_dim]
        k = qkv_ref[:, hidden + h * head_dim:hidden + (h + 1) * head_dim]
        v = qkv_ref[:, 2 * hidden + h * head_dim:2 * hidden + (h + 1) * head_dim]
        scores = jax.lax.dot_general(
            q, k, (((1,), (1,)), ((), ())),
            preferred_element_type=jnp.float32) + bias
        m = jnp.max(scores, axis=-1, keepdims=True)
        e = jnp.exp(scores - m)
        denom = jnp.sum(e, axis=-1, keepdims=True)
        probs = e * pl.reciprocal(denom, approx=True)          # f32 softmax
        probs_ref[0, h] = probs.astype(probs_ref.dtype)
        # In-place per-head store: bounds live ranges, keeps output lane-dense.
        ctx_ref[:, h * head_dim:(h + 1) * head_dim] = jnp.dot(
            probs.astype(jnp.bfloat16), v,
            preferred_element_type=jnp.float32).astype(ctx_ref.dtype)


def _attention_head_kernel(q_ref, k_ref, v_ref, bias_ref, probs_ref, ctx_ref):
    """One (batch, head) pair per grid step (used when head_dim is lane-aligned).

    q/k/v_ref: (S, hd) bf16 blocks selected purely by index_map (narrow DMAs).
    probs_ref: (1, 1, S, S); ctx_ref: (S, hd) column block of the (B*S, D) out.
    """
    S = q_ref.shape[0]
    bias = jnp.broadcast_to(bias_ref[0], (S, S))
    scores = jax.lax.dot_general(
        q_ref[...], k_ref[...], (((1,), (1,)), ((), ())),
        preferred_element_type=jnp.float32) + bias
    m = jnp.max(scores, axis=-1, keepdims=True)
    e = jnp.exp(scores - m)
    denom = jnp.sum(e, axis=-1, keepdims=True)
    probs = e * pl.reciprocal(denom, approx=True)
    probs_ref[0, 0] = probs.astype(probs_ref.dtype)
    ctx_ref[...] = jnp.dot(probs.astype(jnp.bfloat16), v_ref[...],
                           preferred_element_type=jnp.float32).astype(ctx_ref.dtype)


# ----------------------------- kernel wrappers ------------------------------

def dense(x, w, b, *, relu=False, out_dtype=jnp.bfloat16):
    """Tiled dense: [M,K] @ [K,N] + b, bf16 operands / f32 accumulate."""
    M, K = x.shape
    N = w.shape[1]
    tm, tn, tk = _fit_dense_tiles(M, N, K)
    grid = (M // tm, N // tn, K // tk)
    kern = functools.partial(_matmul_kernel, relu=relu)
    return pl.pallas_call(
        kern,
        grid=grid,
        in_specs=[
            pl.BlockSpec((tm, tk), lambda i, j, k: (i, k)),
            pl.BlockSpec((tk, tn), lambda i, j, k: (k, j)),
            pl.BlockSpec((1, tn), lambda i, j, k: (0, j)),
        ],
        out_specs=pl.BlockSpec((tm, tn), lambda i, j, k: (i, j)),
        out_shape=jax.ShapeDtypeStruct((M, N), out_dtype),
        scratch_shapes=[pltpu.VMEM((tm, tn), jnp.float32)],
        compiler_params=pltpu.CompilerParams(
            dimension_semantics=("parallel", "parallel", "arbitrary"),
            vmem_limit_bytes=VMEM_LIMIT),
    )(x.astype(jnp.bfloat16), w, b.reshape(1, N).astype(jnp.float32))


def dense_residual_layernorm(x, w, b, res, gamma, beta, *, out_dtype=jnp.bfloat16):
    """Fused: LayerNorm(x @ w + b + res). Full output feature dim kept per block."""
    M, K = x.shape
    N = w.shape[1]
    tm, tk = _fit_fused_ln_tiles(M, N, K)
    grid = (M // tm, K // tk)
    return pl.pallas_call(
        _matmul_res_ln_kernel,
        grid=grid,
        in_specs=[
            pl.BlockSpec((tm, tk), lambda i, k: (i, k)),
            pl.BlockSpec((tk, N), lambda i, k: (k, 0)),
            pl.BlockSpec((1, N), lambda i, k: (0, 0)),
            pl.BlockSpec((tm, N), lambda i, k: (i, 0)),
            pl.BlockSpec((1, N), lambda i, k: (0, 0)),
            pl.BlockSpec((1, N), lambda i, k: (0, 0)),
        ],
        out_specs=pl.BlockSpec((tm, N), lambda i, k: (i, 0)),
        out_shape=jax.ShapeDtypeStruct((M, N), out_dtype),
        scratch_shapes=[pltpu.VMEM((tm, N), jnp.float32)],
        compiler_params=pltpu.CompilerParams(
            dimension_semantics=("parallel", "arbitrary"),
            vmem_limit_bytes=VMEM_LIMIT),
    )(x.astype(jnp.bfloat16), w, b.reshape(1, N).astype(jnp.float32),
      res, gamma.reshape(1, N), beta.reshape(1, N))


def layernorm(x, gamma, beta, *, out_dtype=jnp.bfloat16):
    """Row-tiled LayerNorm over the last dim (f32 math)."""
    M, D = x.shape
    tm = _pick_tile(M, 512, 16)
    grid = (M // tm,)
    return pl.pallas_call(
        _layernorm_kernel,
        grid=grid,
        in_specs=[
            pl.BlockSpec((tm, D), lambda i: (i, 0)),
            pl.BlockSpec((1, D), lambda i: (0, 0)),
            pl.BlockSpec((1, D), lambda i: (0, 0)),
        ],
        out_specs=pl.BlockSpec((tm, D), lambda i: (i, 0)),
        out_shape=jax.ShapeDtypeStruct((M, D), out_dtype),
        compiler_params=pltpu.CompilerParams(
            dimension_semantics=("parallel",),
            vmem_limit_bytes=VMEM_LIMIT),
    )(x, gamma.reshape(1, D), beta.reshape(1, D))


def multi_head_attention(qkv, bias, B, S, H, hd, D, *, probs_dtype=jnp.float32):
    """qkv: [B*S, 3D] bf16 (Q pre-scaled); bias: [B, 1, S] f32.

    Returns (probs [B,H,S,S], ctx [B*S, D] bf16 lane-dense).
    When head_dim is a multiple of 128 (lane-aligned), heads go into the grid
    (small per-step VMEM footprint, better for v7x's 64 MiB / 2 TensorCores);
    otherwise one batch element (all heads) is processed per grid step with
    narrow per-head ref slices.
    """
    out_shape = (
        jax.ShapeDtypeStruct((B, H, S, S), probs_dtype),
        jax.ShapeDtypeStruct((B * S, D), jnp.bfloat16),
    )
    if hd % 128 == 0 and S % 8 == 0:
        probs, ctx = pl.pallas_call(
            _attention_head_kernel,
            grid=(B, H),
            in_specs=[
                pl.BlockSpec((S, hd), lambda b, h: (b, h)),           # Q head
                pl.BlockSpec((S, hd), lambda b, h: (b, H + h)),       # K head
                pl.BlockSpec((S, hd), lambda b, h: (b, 2 * H + h)),   # V head
                pl.BlockSpec((1, 1, S), lambda b, h: (b, 0, 0)),
            ],
            out_specs=[
                pl.BlockSpec((1, 1, S, S), lambda b, h: (b, h, 0, 0)),
                pl.BlockSpec((S, hd), lambda b, h: (b, h)),
            ],
            out_shape=out_shape,
            compiler_params=pltpu.CompilerParams(
                dimension_semantics=("parallel", "parallel"),
                vmem_limit_bytes=VMEM_LIMIT),
        )(qkv, qkv, qkv, bias)
    else:
        kern = functools.partial(_attention_batch_kernel,
                                 num_heads=H, head_dim=hd, hidden=D)
        probs, ctx = pl.pallas_call(
            kern,
            grid=(B,),
            in_specs=[
                pl.BlockSpec((S, 3 * D), lambda b: (b, 0)),
                pl.BlockSpec((1, 1, S), lambda b: (b, 0, 0)),
            ],
            out_specs=[
                pl.BlockSpec((1, H, S, S), lambda b: (b, 0, 0, 0)),
                pl.BlockSpec((S, D), lambda b: (b, 0)),
            ],
            out_shape=out_shape,
            compiler_params=pltpu.CompilerParams(
                dimension_semantics=("parallel",),
                vmem_limit_bytes=VMEM_LIMIT),
        )(qkv, bias)
    return probs, ctx


# ------------------------------ parameters ----------------------------------

def init_params(key, vocab, dim, layers, heads, ff_dim, max_pos=512, init_std=0.02):
    def normal(k, shape):
        return init_std * jax.random.normal(k, shape, dtype=jnp.float32)

    keys = jax.random.split(key, 4 + layers)
    params = {
        "word_emb": normal(keys[0], (vocab, dim)),
        "pos_emb": normal(keys[1], (max_pos, dim)),
        "type_emb": normal(keys[2], (2, dim)),
        "emb_ln_g": jnp.ones((dim,), jnp.float32),
        "emb_ln_b": jnp.zeros((dim,), jnp.float32),
        "num_heads": heads,
        "layers": [],
    }
    for li in range(layers):
        ks = jax.random.split(keys[4 + li], 6)
        lp = {
            "wq": normal(ks[0], (dim, dim)), "bq": jnp.zeros((dim,), jnp.float32),
            "wk": normal(ks[1], (dim, dim)), "bk": jnp.zeros((dim,), jnp.float32),
            "wv": normal(ks[2], (dim, dim)), "bv": jnp.zeros((dim,), jnp.float32),
            "wo": normal(ks[3], (dim, dim)), "bo": jnp.zeros((dim,), jnp.float32),
            "ln1_g": jnp.ones((dim,), jnp.float32), "ln1_b": jnp.zeros((dim,), jnp.float32),
            "w1": normal(ks[4], (dim, ff_dim)), "b1": jnp.zeros((ff_dim,), jnp.float32),
            "w2": normal(ks[5], (ff_dim, dim)), "b2": jnp.zeros((dim,), jnp.float32),
            "ln2_g": jnp.ones((dim,), jnp.float32), "ln2_b": jnp.zeros((dim,), jnp.float32),
        }
        params["layers"].append(lp)
    return params


def prepare_params(params):
    """Fuse Q|K|V weights (with 1/sqrt(hd) folded into Q) and cast MXU weights to bf16."""
    D = params["word_emb"].shape[1]
    H = params["num_heads"]
    hd = D // H
    scale = 1.0 / math.sqrt(hd)
    prep = {k: params[k] for k in
            ("word_emb", "pos_emb", "type_emb", "emb_ln_g", "emb_ln_b", "num_heads")}
    prep["layers"] = []
    for lp in params["layers"]:
        prep["layers"].append({
            "wqkv": jnp.concatenate([lp["wq"] * scale, lp["wk"], lp["wv"]],
                                    axis=1).astype(jnp.bfloat16),
            "bqkv": jnp.concatenate([lp["bq"] * scale, lp["bk"], lp["bv"]]),
            "wo": lp["wo"].astype(jnp.bfloat16), "bo": lp["bo"],
            "ln1_g": lp["ln1_g"], "ln1_b": lp["ln1_b"],
            "w1": lp["w1"].astype(jnp.bfloat16), "b1": lp["b1"],
            "w2": lp["w2"].astype(jnp.bfloat16), "b2": lp["b2"],
            "ln2_g": lp["ln2_g"], "ln2_b": lp["ln2_b"],
        })
    return prep


# ------------------------------ forward pass ---------------------------------

def vanilla_encoder_forward(prep, input_ids, mask):
    """Returns (transformed [B,S,D], mask, attentions tuple of [B,H,S,S])."""
    B, S = input_ids.shape
    D = prep["word_emb"].shape[1]
    H = prep["num_heads"]
    hd = D // H

    # Embeddings (gather is XLA glue); token_type_ids default to zeros.
    emb = (prep["word_emb"][input_ids]
           + prep["pos_emb"][:S][None, :, :]
           + prep["type_emb"][0][None, None, :]).astype(jnp.float32)
    h = layernorm(emb.reshape(B * S, D), prep["emb_ln_g"], prep["emb_ln_b"])  # bf16

    # HF extended attention mask: (1 - mask) * -10000, additive over key positions.
    bias = ((1.0 - mask.astype(jnp.float32)) * -10000.0).reshape(B, 1, S)

    attentions = []
    for lp in prep["layers"]:
        qkv = dense(h, lp["wqkv"], lp["bqkv"])                       # [B*S, 3D] bf16
        probs, ctx = multi_head_attention(qkv, bias, B, S, H, hd, D)
        attentions.append(probs)                                     # [B, H, S, S] f32
        h = dense_residual_layernorm(ctx, lp["wo"], lp["bo"], h,
                                     lp["ln1_g"], lp["ln1_b"])       # attn out + res + LN
        inter = dense(h, lp["w1"], lp["b1"], relu=True)              # FFN up + relu
        h = dense_residual_layernorm(inter, lp["w2"], lp["b2"], h,
                                     lp["ln2_g"], lp["ln2_b"])       # FFN down + res + LN

    transformed = h.astype(jnp.float32).reshape(B, S, D)
    return transformed, mask, tuple(attentions)


# ---------------------------------- main -------------------------------------

if __name__ == "__main__":
    # Small, deterministic configuration consistent with VanillaEncoder.__init__:
    # char_vocabulary_size=50, dim=32, layers=2, attention_heads=8, ff_dim=2*dim.
    vocab, dim, layers, heads = 50, 32, 2, 8
    ff_dim = 2 * dim
    B, S = 2, 8

    key = jax.random.PRNGKey(0)
    pkey, dkey = jax.random.split(key)
    params = init_params(pkey, vocab, dim, layers, heads, ff_dim)
    prep = prepare_params(params)

    input_ids = jax.random.randint(dkey, (B, S), 0, vocab, dtype=jnp.int32)
    mask = jnp.array([[1] * S, [1] * 5 + [0] * (S - 5)], dtype=jnp.int32)

    transformed, mask_out, attentions = vanilla_encoder_forward(prep, input_ids, mask)
    jax.block_until_ready((transformed, mask_out, attentions))

    assert transformed.shape == (B, S, dim)
    assert mask_out.shape == (B, S)
    assert len(attentions) == layers and attentions[0].shape == (B, heads, S, S)
    assert bool(jnp.all(jnp.isfinite(transformed)))
    print("KERNEL_OK")
</pallas_src>

<mosaic_0001>
module attributes {stable_mosaic.version = 11 : i64} {
  func.func @_layernorm_kernel(%arg0: i32, %arg1: memref<16x32xf32, #tpu.memory_space<vmem>>, %arg2: memref<1x32xf32, #tpu.memory_space<vmem>>, %arg3: memref<1x32xf32, #tpu.memory_space<vmem>>, %arg4: memref<16x32xbf16, #tpu.memory_space<vmem>>) attributes {dimension_semantics = [#tpu.dimension_semantics<parallel>], iteration_bounds = array<i64: 1>, scalar_prefetch = 0 : i64, scratch_operands = 0 : i64, tpu.core_type = #tpu.core_type<tc>, window_params = [{transform_indices = @transform_0, window_bounds = array<i64: 16, 32>}, {pipeline_mode = #tpu.pipeline_mode<synchronous>, transform_indices = @transform_1, window_bounds = array<i64: 1, 32>}, {pipeline_mode = #tpu.pipeline_mode<synchronous>, transform_indices = @transform_2, window_bounds = array<i64: 1, 32>}, {transform_indices = @transform_3, window_bounds = array<i64: 16, 32>}]} {
    %c0 = arith.constant 0 : index
    %c0_0 = arith.constant 0 : index
    %0 = vector.load %arg1[%c0, %c0_0] : memref<16x32xf32, #tpu.memory_space<vmem>>, vector<16x32xf32>
    %cst = arith.constant dense<0.000000e+00> : vector<16xf32>
    %1 = vector.multi_reduction <add>, %0, %cst [1] : vector<16x32xf32> to vector<16xf32>
    %2 = vector.shape_cast %1 : vector<16xf32> to vector<16x1xf32>
    %cst_1 = arith.constant 3.200000e+01 : f32
    %3 = vector.broadcast %cst_1 : f32 to vector<16x1xf32>
    %4 = arith.divf %2, %3 : vector<16x1xf32>
    %5 = vector.broadcast %4 : vector<16x1xf32> to vector<16x32xf32>
    %6 = arith.subf %0, %5 : vector<16x32xf32>
    %7 = arith.mulf %6, %6 : vector<16x32xf32>
    %cst_2 = arith.constant dense<0.000000e+00> : vector<16xf32>
    %8 = vector.multi_reduction <add>, %7, %cst_2 [1] : vector<16x32xf32> to vector<16xf32>
    %9 = vector.shape_cast %8 : vector<16xf32> to vector<16x1xf32>
    %cst_3 = arith.constant 3.200000e+01 : f32
    %10 = vector.broadcast %cst_3 : f32 to vector<16x1xf32>
    %11 = arith.divf %9, %10 : vector<16x1xf32>
    %12 = vector.broadcast %4 : vector<16x1xf32> to vector<16x32xf32>
    %13 = arith.subf %0, %12 : vector<16x32xf32>
    %cst_4 = arith.constant 9.99999996E-13 : f32
    %14 = vector.broadcast %cst_4 : f32 to vector<16x1xf32>
    %15 = arith.addf %11, %14 : vector<16x1xf32>
    %16 = math.rsqrt %15 : vector<16x1xf32>
    %17 = vector.broadcast %16 : vector<16x1xf32> to vector<16x32xf32>
    %18 = arith.mulf %13, %17 : vector<16x32xf32>
    %c0_5 = arith.constant 0 : index
    %c0_6 = arith.constant 0 : index
    %19 = vector.load %arg2[%c0_5, %c0_6] : memref<1x32xf32, #tpu.memory_space<vmem>>, vector<1x32xf32>
    %20 = vector.broadcast %19 : vector<1x32xf32> to vector<16x32xf32>
    %21 = arith.mulf %18, %20 : vector<16x32xf32>
    %c0_7 = arith.constant 0 : index
    %c0_8 = arith.constant 0 : index
    %22 = vector.load %arg3[%c0_7, %c0_8] : memref<1x32xf32, #tpu.memory_space<vmem>>, vector<1x32xf32>
    %23 = vector.broadcast %22 : vector<1x32xf32> to vector<16x32xf32>
    %24 = arith.addf %21, %23 : vector<16x32xf32>
    %25 = arith.truncf %24 : vector<16x32xf32> to vector<16x32xbf16>
    %c0_9 = arith.constant 0 : index
    %c0_10 = arith.constant 0 : index
    %26 = vector.load %arg4[%c0_9, %c0_10] : memref<16x32xbf16, #tpu.memory_space<vmem>>, vector<16x32xbf16>
    tpu.vector_store %arg4[%c0_9, %c0_10], %25 {strides = array<i32>} : memref<16x32xbf16, #tpu.memory_space<vmem>>, vector<16x32xbf16>,
    return
  }
  func.func @transform_0(%arg0: i32) -> (i32, i32) {
    %c0_i32 = arith.constant 0 : i32
    %c0_i32_0 = arith.constant 0 : i32
    return %arg0, %c0_i32 : i32, i32
  }
  func.func @transform_1(%arg0: i32) -> (i32, i32) {
    %c0_i32 = arith.constant 0 : i32
    %c0_i32_0 = arith.constant 0 : i32
    %c0_i32_1 = arith.constant 0 : i32
    return %c0_i32, %c0_i32_0 : i32, i32
  }
  func.func @transform_2(%arg0: i32) -> (i32, i32) {
    %c0_i32 = arith.constant 0 : i32
    %c0_i32_0 = arith.constant 0 : i32
    %c0_i32_1 = arith.constant 0 : i32
    return %c0_i32, %c0_i32_0 : i32, i32
  }
  func.func @transform_3(%arg0: i32) -> (i32, i32) {
    %c0_i32 = arith.constant 0 : i32
    %c0_i32_0 = arith.constant 0 : i32
    return %arg0, %c0_i32 : i32, i32
  }
}

</mosaic_0001>

<llo_original>
// kernel: tpu_custom_call.1
$region0: #{tpu_custom_call.1}
  #allocation0 [shape = 'u32[]', space=smem, size = 0x4, offset = 0x4, fixed_abs, tag = 'smem constant byte address 0x4 - core index']
  #allocation1 [shape = 'u32[144,128]{1,0:T(1,128)}', space=vmem, size = 0x12000, scoped, tag = 'internal scratch']
  %s0 = inlined_call_operand.hbm [shape: f32[16,32], index: 0, kind: input, shape index: {}]
  %s1 = inlined_call_operand.vmem [shape: f32[1,32], index: 1, kind: input, shape index: {}]
  %s2 = inlined_call_operand.vmem [shape: f32[1,32], index: 2, kind: input, shape index: {}]
  %s3 = inlined_call_operand.hbm [shape: bf16[16,32], index: 3, kind: output, shape index: {}]
  %s4 = sld [smem:[#allocation0]]
  $region26: #{tpu_custom_call.1} parent=0
    _
  %s6 = ssub.s32 1, %s4
  %s7 = scalar_select 0, %s6, %s4
  $region1: #{tpu_custom_call.1} parent=0
    #allocation2 [shape = 'u8[8192]{0}', space=vmem, size = 0x2000, scoped, tag = 'input window, operand 0, single buffered']
    #allocation3 [shape = 's32[1]{0}', space=sflag, size = 0x4, scoped, tag = 'scoped memory for tpu_custom_call.1']
    #allocation4 [shape = 's32[1]{0}', space=sflag, size = 0x4, scoped, tag = 'scoped memory for tpu_custom_call.1']
    #allocation5 [shape = 'u8[4096]{0}', space=vmem, size = 0x1000, scoped, tag = 'output window, operand 0, single buffered']
    %8 = vsyncpa [#allocation3], 0
    %9 = vsyncpa [#allocation4], 0
    // Predicated region
    $region2: #{tpu_custom_call.1} parent=1 // pred_check
      _
    $region3: #{tpu_custom_call.1} parent=1 // pred_check_branch
      %11 = sbr.rel (0) target = $region5
    $region4: #{tpu_custom_call.1} parent=1 // pred_region
      %s13 = ssub.s32 256, 256
      %14 = vsyncadd [#allocation3], %s13
      %s15 = sshll.u32 [#allocation2], 4
      %s16 = int_to_ptr.vmem [resolvable:$true] %s15
      %21 = dma.hbm_to_vmem [thread:$0]  %s0, 256, %s16, [#allocation3], 128, 128, 8
    $region5: #{tpu_custom_call.1} parent=1 // pred_fallthru
      _
    // Predicated region
    $region6: #{tpu_custom_call.1} parent=1 // pred_check
      _
    $region7: #{tpu_custom_call.1} parent=1 // pred_check_branch
      %23 = sbr.rel (0) target = $region9
    $region8: #{tpu_custom_call.1} parent=1 // pred_region
      _
    $region9: #{tpu_custom_call.1} parent=1 // pred_fallthru
      _
    // Predicated region
    $region10: #{tpu_custom_call.1} parent=1 // pred_check
      _
    $region11: #{tpu_custom_call.1} parent=1 // pred_check_branch
      %25 = sbr.rel (0) target = $region13
    $region12: #{tpu_custom_call.1} parent=1 // pred_region
      _
    $region13: #{tpu_custom_call.1} parent=1 // pred_fallthru
      _
    // Predicated region
    $region14: #{tpu_custom_call.1} parent=1 // pred_check
      _
    $region15: #{tpu_custom_call.1} parent=1 // pred_check_branch
      %27 = sbr.rel (0) target = $region17
    $region16: #{tpu_custom_call.1} parent=1 // pred_region
      %28 = dma.done [#allocation3], 256
    $region17: #{tpu_custom_call.1} parent=1 // pred_fallthru
      _
    %v29 = vld [vmem:[#allocation2] sm:$0xff]
    %v30 = vld [vmem:[#allocation2 + $0x8] sm:$0xff]
    %vm31 = vcmask 261120
    %v32 = vsel %vm31, %v29, 0.0
    %33 = vadd.xlane.f32.xlu0 %v32
    %v34 = vpop.xlane.xlu0 %33
    %v35 = vsel %vm31, %v30, 0.0
    %36 = vadd.xlane.f32.xlu0 %v35
    %v37 = vpop.xlane.xlu0 %36
    %v38 = vrcp.pop 32.0
    %v39 = vmul.f32 %v34, %v38
    %v40 = vmul.f32 %v37, %v38
    %v41 = vsub.f32 %v29, %v39
    %v42 = vsub.f32 %v30, %v40
    %v43 = vmul.f32 %v41, %v41
    %v44 = vmul.f32 %v42, %v42
    %v45 = vsel %vm31, %v43, 0.0
    %46 = vadd.xlane.f32.xlu0 %v45
    %v47 = vpop.xlane.xlu0 %46
    %v48 = vsel %vm31, %v44, 0.0
    %49 = vadd.xlane.f32.xlu0 %v48
    %v50 = vpop.xlane.xlu0 %49
    %v51 = vmul.f32 %v47, %v38
    %v52 = vmul.f32 %v50, %v38
    %v53 = vadd.f32 %v51, 1e-12
    %v54 = vadd.f32 %v52, 1e-12
    %v55 = vrsqrt.pop %v53
    %v56 = vrsqrt.pop %v54
    %v57 = vmul.f32 %v41, %v55
    %v58 = vmul.f32 %v42, %v56
    %v59 = vld [vmem:[%s1] sm:$0x1]
    %v61 = vlaneseq
    %v62 = vshrl.u32 %v61, 7
    %v63 = vsub.s32 0, %v62
    %v64 = vrot.slane %v59, %v63
    %v66 = vmul.f32 %v57, %v64
    %v67 = vmul.f32 %v58, %v64
    %v68 = vld [vmem:[%s2] sm:$0x1]
    %v70 = vlaneseq
    %v71 = vshrl.u32 %v70, 7
    %v72 = vsub.s32 0, %v71
    %v73 = vrot.slane %v68, %v72
    %v75 = vadd.f32 %v66, %v73
    %v76 = vadd.f32 %v67, %v73
    %v77 = vpack.c.bf16 %v76, %v75
    %v79 = vunpack.c.l.b16 %v77
    %v80 = vunpack.c.h.b16 %v77
    %v81 = vpack.c.b16 %v79, %v79
    %v82 = vpack.c.b16 %v80, %v80
    %vm85 = vcmask 257024
    %86 = vst.msk [vmem:[#allocation5] sm:$0xf] %vm85, %v81
    %87 = vst.msk [vmem:[#allocation5 + $0x4] sm:$0xf] %vm85, %v82
    // Predicated region
    $region18: #{tpu_custom_call.1} parent=1 // pred_check
      _
    $region19: #{tpu_custom_call.1} parent=1 // pred_check_branch
      %89 = sbr.rel (0) target = $region21
    $region20: #{tpu_custom_call.1} parent=1 // pred_region
      %s91 = ssub.s32 128, 128
      %92 = vsyncadd [#allocation4], %s91
      %s93 = sshll.u32 [#allocation5], 4
      %s94 = int_to_ptr.vmem [resolvable:$true] %s93
      %99 = dma.vmem_to_hbm [thread:$0]  %s94, 128, %s3, [#allocation4], 64, 64, 4
    $region21: #{tpu_custom_call.1} parent=1 // pred_fallthru
      _
    // Predicated region
    $region22: #{tpu_custom_call.1} parent=1 // pred_check
      _
    $region23: #{tpu_custom_call.1} parent=1 // pred_check_branch
      %101 = sbr.rel (0) target = $region25
    $region24: #{tpu_custom_call.1} parent=1 // pred_region
      %102 = dma.done [#allocation4], 128
    $region25: #{tpu_custom_call.1} parent=1 // pred_fallthru
      _
    %103 = vsyncpa [#allocation3], 1
    %104 = vsyncpa [#allocation4], 1

</llo_original>
